<compile_context>
chip_gen: v6e
topology: v6e:2x2x1
jax: 0.10.0
libtpu: 0.0.40
codegen_flags: <defaults>
</compile_context>

<pallas_src>
import jax
import jax.numpy as jnp
from jax.experimental import pallas as pl
from jax.experimental.pallas import tpu as pltpu

NUM_IN = 33
HIDDEN = 34
NUM_OUT = 1


def _round_up(x, m):
    return (x + m - 1) // m * m


def mlp_kernel(x_ref, w1_ref, b1_ref, w2_ref, b2_ref, o_ref):
    """One batch tile, batch on the lane axis (lane-dense layout).

    x_ref : (33, TB) bf16   -- streamed / double-buffered per grid step
    w1_ref: (34, 33) bf16   -- VMEM-resident (constant index map)
    b1_ref: (34, 1)  f32
    w2_ref: (34, 1)  f32
    b2_ref: (1,)     f32    -- SMEM scalar
    o_ref : (1, TB)  f32    -- lane-dense output tile
    """
    # Linear(33 -> 34): MXU matmul, f32 accumulation.
    h = jnp.dot(w1_ref[...], x_ref[...], preferred_element_type=jnp.float32)  # (34, TB)
    h = jnp.maximum(h + b1_ref[...], 0.0)                                     # bias + ReLU (f32 VPU)
    # Linear(34 -> 1): VPU multiply + cross-sublane reduce (no second MXU pass).
    z = jnp.sum(h * w2_ref[...], axis=0, keepdims=True) + b2_ref[0]           # (1, TB)
    # Sigmoid: exp and approx reciprocal both land on the EUP slot.
    o_ref[...] = pl.reciprocal(1.0 + jnp.exp(-z), approx=True)


def mlp_forward(x, w1, b1, w2, b2, *, block_b=1024):
    """y = sigmoid(relu(x @ w1 + b1) @ w2 + b2); returns (B, 1) float32."""
    x = x.reshape(x.shape[0], -1)            # torch.nn.Flatten
    B = x.shape[0]

    # Lane-dense batch tile: multiple of 128 lanes (hence also of 8 sublanes).
    TB = min(block_b, _round_up(max(B, 1), 128))
    Bp = _round_up(B, TB)
    n_tiles = Bp // TB

    # Wrapper-side layout plumbing: pad batch, put it on the lane axis, cast the
    # streamed operand (and matching weight) to bf16; accumulation stays f32.
    x_t = jnp.pad(x, ((0, Bp - B), (0, 0))).T.astype(jnp.bfloat16)    # (33, Bp)
    w1_t = w1.T.astype(jnp.bfloat16)                                  # (34, 33)
    b1_c = b1.reshape(HIDDEN, 1).astype(jnp.float32)                  # (34, 1)
    w2_c = w2.reshape(HIDDEN, NUM_OUT).astype(jnp.float32)            # (34, 1)
    b2_c = b2.reshape(NUM_OUT).astype(jnp.float32)                    # (1,)

    out = pl.pallas_call(
        mlp_kernel,
        out_shape=jax.ShapeDtypeStruct((1, Bp), jnp.float32),
        grid=(n_tiles,),
        in_specs=[
            pl.BlockSpec((NUM_IN, TB), lambda i: (0, i)),       # x: streamed tile
            pl.BlockSpec((HIDDEN, NUM_IN), lambda i: (0, 0)),   # weights stay resident
            pl.BlockSpec((HIDDEN, 1), lambda i: (0, 0)),
            pl.BlockSpec((HIDDEN, 1), lambda i: (0, 0)),
            pl.BlockSpec(memory_space=pltpu.MemorySpace.SMEM),  # scalar bias b2
        ],
        out_specs=pl.BlockSpec((1, TB), lambda i: (0, i)),      # lane-dense output
        compiler_params=pltpu.CompilerParams(
            dimension_semantics=("parallel",),                  # v7x: 2 TCs share batch tiles
        ),
    )(x_t, w1_t, b1_c, w2_c, b2_c)

    return out.reshape(Bp)[:B].reshape(B, NUM_OUT)


def init_params(key):
    """Deterministic init mimicking torch.nn.Linear default U(-1/sqrt(fan_in), +)."""
    k1, k2, k3, k4 = jax.random.split(key, 4)
    bound1 = 1.0 / jnp.sqrt(jnp.float32(NUM_IN))
    bound2 = 1.0 / jnp.sqrt(jnp.float32(HIDDEN))
    w1 = jax.random.uniform(k1, (NUM_IN, HIDDEN), jnp.float32, -bound1, bound1)
    b1 = jax.random.uniform(k2, (HIDDEN,), jnp.float32, -bound1, bound1)
    w2 = jax.random.uniform(k3, (HIDDEN, NUM_OUT), jnp.float32, -bound2, bound2)
    b2 = jax.random.uniform(k4, (NUM_OUT,), jnp.float32, -bound2, bound2)
    return w1, b1, w2, b2


def reference_forward(x, w1, b1, w2, b2):
    """Plain-JAX reference (same bf16 cast of the streamed operands as the kernel)."""
    x = x.reshape(x.shape[0], -1)
    xb = x.astype(jnp.bfloat16).astype(jnp.float32)
    w1b = w1.astype(jnp.bfloat16).astype(jnp.float32)
    h = jnp.maximum(xb @ w1b + b1[None, :], 0.0)
    return jax.nn.sigmoid(h @ w2 + b2[None, :])


if __name__ == "__main__":
    key = jax.random.PRNGKey(0)
    kx, kx2, kp = jax.random.split(key, 3)
    w1, b1, w2, b2 = init_params(kp)

    # Small test: single tile, batch padded up to 128.
    B = 4
    x = jax.random.normal(kx, (B, NUM_IN), dtype=jnp.float32)
    y = mlp_forward(x, w1, b1, w2, b2)
    jax.block_until_ready(y)
    y_ref = reference_forward(x, w1, b1, w2, b2)
    assert y.shape == (B, NUM_OUT)
    assert jnp.allclose(y, y_ref, atol=5e-3, rtol=0.0), float(jnp.max(jnp.abs(y - y_ref)))

    # Multi-tile test: exercises the batch grid, padding and lane-dense writeback.
    B2 = 300
    x2 = jax.random.normal(kx2, (B2, NUM_IN), dtype=jnp.float32)
    y2 = mlp_forward(x2, w1, b1, w2, b2, block_b=128)
    jax.block_until_ready(y2)
    y2_ref = reference_forward(x2, w1, b1, w2, b2)
    assert y2.shape == (B2, NUM_OUT)
    assert jnp.allclose(y2, y2_ref, atol=5e-3, rtol=0.0), float(jnp.max(jnp.abs(y2 - y2_ref)))

    print("KERNEL_OK")
</pallas_src>

<mosaic_0001>
module attributes {stable_mosaic.version = 11 : i64} {
  func.func @mlp_kernel(%arg0: i32, %arg1: memref<33x128xbf16, #tpu.memory_space<vmem>>, %arg2: memref<34x33xbf16, #tpu.memory_space<vmem>>, %arg3: memref<34x1xf32, #tpu.memory_space<vmem>>, %arg4: memref<34x1xf32, #tpu.memory_space<vmem>>, %arg5: memref<1xf32, #tpu.memory_space<smem>>, %arg6: memref<1x128xf32, #tpu.memory_space<vmem>>) attributes {dimension_semantics = [#tpu.dimension_semantics<parallel>], iteration_bounds = array<i64: 1>, scalar_prefetch = 0 : i64, scratch_operands = 0 : i64, tpu.core_type = #tpu.core_type<tc>, window_params = [{transform_indices = @transform_0, window_bounds = array<i64: 33, 128>}, {pipeline_mode = #tpu.pipeline_mode<synchronous>, transform_indices = @transform_1, window_bounds = array<i64: 34, 33>}, {pipeline_mode = #tpu.pipeline_mode<synchronous>, transform_indices = @transform_2, window_bounds = array<i64: 34, 1>}, {pipeline_mode = #tpu.pipeline_mode<synchronous>, transform_indices = @transform_3, window_bounds = array<i64: 34, 1>}, {transform_indices = @transform_4, window_bounds = array<i64: 1>}, {transform_indices = @transform_5, window_bounds = array<i64: 1, 128>}]} {
    %c0 = arith.constant 0 : index
    %c0_0 = arith.constant 0 : index
    %0 = vector.load %arg2[%c0, %c0_0] : memref<34x33xbf16, #tpu.memory_space<vmem>>, vector<34x33xbf16>
    %c0_1 = arith.constant 0 : index
    %c0_2 = arith.constant 0 : index
    %1 = vector.load %arg1[%c0_1, %c0_2] : memref<33x128xbf16, #tpu.memory_space<vmem>>, vector<33x128xbf16>
    %cst = arith.constant dense<0.000000e+00> : vector<34x128xf32>
    %2 = tpu.matmul %0, %1, %cst {dimension_numbers = #tpu.dot_dimension_numbers<[1], [0], [0], [1], [0, 0, 1, 1], [], []>} : vector<34x33xbf16>, vector<33x128xbf16>, vector<34x128xf32> -> vector<34x128xf32>
    %c0_3 = arith.constant 0 : index
    %c0_4 = arith.constant 0 : index
    %3 = vector.load %arg3[%c0_3, %c0_4] : memref<34x1xf32, #tpu.memory_space<vmem>>, vector<34x1xf32>
    %4 = vector.broadcast %3 : vector<34x1xf32> to vector<34x128xf32>
    %5 = arith.addf %2, %4 : vector<34x128xf32>
    %cst_5 = arith.constant 0.000000e+00 : f32
    %6 = vector.broadcast %cst_5 : f32 to vector<34x128xf32>
    %7 = arith.maximumf %5, %6 : vector<34x128xf32>
    %c0_6 = arith.constant 0 : index
    %c0_7 = arith.constant 0 : index
    %8 = vector.load %arg4[%c0_6, %c0_7] : memref<34x1xf32, #tpu.memory_space<vmem>>, vector<34x1xf32>
    %9 = vector.broadcast %8 : vector<34x1xf32> to vector<34x128xf32>
    %10 = arith.mulf %7, %9 : vector<34x128xf32>
    %cst_8 = arith.constant dense<0.000000e+00> : vector<128xf32>
    %11 = vector.multi_reduction <add>, %10, %cst_8 [0] : vector<34x128xf32> to vector<128xf32>
    %12 = vector.shape_cast %11 : vector<128xf32> to vector<1x128xf32>
    %c0_9 = arith.constant 0 : index
    %13 = memref.load %arg5[%c0_9] : memref<1xf32, #tpu.memory_space<smem>>
    %14 = vector.broadcast %13 : f32 to vector<1x128xf32>
    %15 = arith.addf %12, %14 : vector<1x128xf32>
    %cst_10 = arith.constant 0.000000e+00 : f32
    %16 = vector.broadcast %cst_10 : f32 to vector<1x128xf32>
    %17 = arith.subf %16, %15 : vector<1x128xf32>
    %18 = math.exp %17 : vector<1x128xf32>
    %cst_11 = arith.constant 1.000000e+00 : f32
    %19 = vector.broadcast %cst_11 : f32 to vector<1x128xf32>
    %20 = arith.addf %19, %18 : vector<1x128xf32>
    %21 = tpu.reciprocal %20 {approx = true} : vector<1x128xf32> -> vector<1x128xf32>
    %c0_12 = arith.constant 0 : index
    %c0_13 = arith.constant 0 : index
    %22 = vector.load %arg6[%c0_12, %c0_13] : memref<1x128xf32, #tpu.memory_space<vmem>>, vector<1x128xf32>
    tpu.vector_store %arg6[%c0_12, %c0_13], %21 {strides = array<i32>} : memref<1x128xf32, #tpu.memory_space<vmem>>, vector<1x128xf32>,
    return
  }
  func.func @transform_0(%arg0: i32) -> (i32, i32) {
    %c0_i32 = arith.constant 0 : i32
    %c0_i32_0 = arith.constant 0 : i32
    return %c0_i32, %arg0 : i32, i32
  }
  func.func @transform_1(%arg0: i32) -> (i32, i32) {
    %c0_i32 = arith.constant 0 : i32
    %c0_i32_0 = arith.constant 0 : i32
    %c0_i32_1 = arith.constant 0 : i32
    return %c0_i32, %c0_i32_0 : i32, i32
  }
  func.func @transform_2(%arg0: i32) -> (i32, i32) {
    %c0_i32 = arith.constant 0 : i32
    %c0_i32_0 = arith.constant 0 : i32
    %c0_i32_1 = arith.constant 0 : i32
    return %c0_i32, %c0_i32_0 : i32, i32
  }
  func.func @transform_3(%arg0: i32) -> (i32, i32) {
    %c0_i32 = arith.constant 0 : i32
    %c0_i32_0 = arith.constant 0 : i32
    %c0_i32_1 = arith.constant 0 : i32
    return %c0_i32, %c0_i32_0 : i32, i32
  }
  func.func @transform_4(%arg0: i32) -> i32 {
    %c0_i32 = arith.constant 0 : i32
    %c0_i32_0 = arith.constant 0 : i32
    return %c0_i32 : i32
  }
  func.func @transform_5(%arg0: i32) -> (i32, i32) {
    %c0_i32 = arith.constant 0 : i32
    %c0_i32_0 = arith.constant 0 : i32
    return %c0_i32, %arg0 : i32, i32
  }
}

</mosaic_0001>

<llo_original>
// kernel: tpu_custom_call.1
$region0: #{tpu_custom_call.1}
  #allocation0 [shape = 'u32[]', space=smem, size = 0x4, offset = 0x4, fixed_abs, tag = 'smem constant byte address 0x4 - core index']
  #allocation1 [shape = 'u32[144,128]{1,0:T(1,128)}', space=vmem, size = 0x12000, scoped, tag = 'internal scratch']
  #allocation2 [shape = 'f32[1]{0:T(128)S(6)}', space=smem, size = 0x200, scoped, tag = 'scoped memory for tpu_custom_call.1']
  %s0 = inlined_call_operand.vmem [shape: bf16[33,128], index: 0, kind: input, shape index: {}]
  %s1 = inlined_call_operand.vmem [shape: bf16[34,33], index: 1, kind: input, shape index: {}]
  %s2 = inlined_call_operand.vmem [shape: f32[34,1], index: 2, kind: input, shape index: {}]
  %s3 = inlined_call_operand.vmem [shape: f32[34,1], index: 3, kind: input, shape index: {}]
  %s4 = inlined_call_operand.<no memory space> [shape: f32[1], index: 4, kind: input, shape index: {}]
  %s5 = inlined_call_operand.hbm [shape: f32[1,128], index: 5, kind: output, shape index: {}]
  %s6 = sld [smem:[#allocation0]]
  $region30: #{tpu_custom_call.1} parent=0
    _
  %s8 = ssub.s32 1, %s6
  %s9 = scalar_select 0, %s8, %s6
  %10 = sst [smem:[#allocation2]] %s4
  $region1: #{tpu_custom_call.1} parent=0
    #allocation3 [shape = 'u8[512]{0}', space=vmem, size = 0x400, scoped, tag = 'output window, operand 0, single buffered']
    #allocation4 [shape = 's32[1]{0}', space=sflag, size = 0x4, scoped, tag = 'scoped memory for tpu_custom_call.1']
    %11 = vsyncpa [#allocation4], 0
    // Predicated region
    $region2: #{tpu_custom_call.1} parent=1 // pred_check
      _
    $region3: #{tpu_custom_call.1} parent=1 // pred_check_branch
      %13 = sbr.rel (0) target = $region5
    $region4: #{tpu_custom_call.1} parent=1 // pred_region
      _
    $region5: #{tpu_custom_call.1} parent=1 // pred_fallthru
      _
    // Predicated region
    $region6: #{tpu_custom_call.1} parent=1 // pred_check
      _
    $region7: #{tpu_custom_call.1} parent=1 // pred_check_branch
      %15 = sbr.rel (0) target = $region9
    $region8: #{tpu_custom_call.1} parent=1 // pred_region
      _
    $region9: #{tpu_custom_call.1} parent=1 // pred_fallthru
      _
    // Predicated region
    $region10: #{tpu_custom_call.1} parent=1 // pred_check
      _
    $region11: #{tpu_custom_call.1} parent=1 // pred_check_branch
      %17 = sbr.rel (0) target = $region13
    $region12: #{tpu_custom_call.1} parent=1 // pred_region
      _
    $region13: #{tpu_custom_call.1} parent=1 // pred_fallthru
      _
    // Predicated region
    $region14: #{tpu_custom_call.1} parent=1 // pred_check
      _
    $region15: #{tpu_custom_call.1} parent=1 // pred_check_branch
      %19 = sbr.rel (0) target = $region17
    $region16: #{tpu_custom_call.1} parent=1 // pred_region
      _
    $region17: #{tpu_custom_call.1} parent=1 // pred_fallthru
      _
    // Predicated region
    $region18: #{tpu_custom_call.1} parent=1 // pred_check
      _
    $region19: #{tpu_custom_call.1} parent=1 // pred_check_branch
      %21 = sbr.rel (0) target = $region21
    $region20: #{tpu_custom_call.1} parent=1 // pred_region
      _
    $region21: #{tpu_custom_call.1} parent=1 // pred_fallthru
      _
    %v23 = vld [vmem:[%s1] sm:$0xf]
    %v24 = vld [vmem:[%s1 + $0x4] sm:$0xf]
    %v25 = vld [vmem:[%s1 + $0x8] sm:$0xf]
    %v26 = vld [vmem:[%s1 + $0xc] sm:$0xf]
    %v27 = vld [vmem:[%s1 + $0x10] sm:$0x1]
    %v28 = vld [vmem:[%s0] sm:$0xf]
    %v29 = vld [vmem:[%s0 + $0x4] sm:$0xf]
    %v30 = vld [vmem:[%s0 + $0x8] sm:$0xf]
    %v31 = vld [vmem:[%s0 + $0xc] sm:$0xf]
    %v32 = vld [vmem:[%s0 + $0x10] sm:$0x1]
    %v33 = vld [vmem:[%s2] sm:$0xff]
    %v34 = vld [vmem:[%s2 + $0x8] sm:$0xff]
    %v35 = vld [vmem:[%s2 + $0x10] sm:$0xff]
    %v36 = vld [vmem:[%s2 + $0x18] sm:$0xff]
    %v37 = vld [vmem:[%s2 + $0x20] sm:$0x3]
    %39 = vset.pattern.permute.xlu0 0
    %40 = vperm.xlu0 %39, %v33
    %v41 = vpop.permute.xlu0 %40
    %44 = vset.pattern.permute.xlu0 0
    %45 = vperm.xlu0 %44, %v34
    %v46 = vpop.permute.xlu0 %45
    %49 = vset.pattern.permute.xlu0 0
    %50 = vperm.xlu0 %49, %v35
    %v51 = vpop.permute.xlu0 %50
    %54 = vset.pattern.permute.xlu0 0
    %55 = vperm.xlu0 %54, %v36
    %v56 = vpop.permute.xlu0 %55
    %59 = vset.pattern.permute.xlu0 0
    %60 = vperm.xlu0 %59, %v37
    %v61 = vpop.permute.xlu0 %60
    %v68 = vunpack.c.l.b16 %v23
    %v69 = vunpack.c.l.b16 %v24
    %v70 = vunpack.c.l.b16 %v25
    %v71 = vunpack.c.l.b16 %v26
    %v72 = vunpack.c.l.b16 %v27
    %v73 = vpack.c.b16 %v69, %v68
    %v74 = vpack.c.b16 %v71, %v70
    %v75 = vpack.c.b16 %v72, %v72
    %v81 = vunpack.c.l.b16 %v28
    %v82 = vunpack.c.l.b16 %v29
    %v83 = vunpack.c.l.b16 %v30
    %v84 = vunpack.c.l.b16 %v31
    %v85 = vunpack.c.l.b16 %v32
    %v86 = vpack.c.b16 %v82, %v81
    %v87 = vpack.c.b16 %v84, %v83
    %v88 = vpack.c.b16 %v85, %v85
    %vm91 = vcmask 269312
    %v93 = vsel %vm91, %v73, 0
    %v96 = vsel %vm91, %v74, 0
    %v99 = vsel %vm91, %v75, 0
    %vm101 = vcmask 1040384
    %v102 = vsel 0, 4294967295, 65535
    %v103 = vsel %vm101, %v102, 0
    %v105 = vand.u32 %v88, %v103
    %107 = vmatprep.subr.bf16.mxu0 0
    %108 = vmatpush1.bf16.msra.mxu0 0
    %109 = vmatprep.subr.bf16.mxu0 0
    %110 = vmatpush1.bf16.msra.mxu0 0
    %111 = vmatprep.subr.bf16.mxu0 0
    %112 = vmatpush1.bf16.msra.mxu0 0
    %113 = vmatprep.subr.bf16.mxu0 0
    %114 = vmatpush1.bf16.msra.mxu0 0
    %115 = vmatprep.subr.bf16.mxu0 0
    %116 = vmatpush1.bf16.msra.mxu0 0
    %117 = vmatprep.subr.bf16.mxu0 0
    %118 = vmatpush1.bf16.msra.mxu0 %v105
    %119 = vmatprep.subr.bf16.mxu0 0
    %120 = vmatpush1.bf16.msra.mxu0 %v87
    %121 = vmatprep.subr.bf16.mxu0 0
    %122 = vmatpush1.bf16.msra.mxu0 %v86
    %123 = vmatprep.subr.bf16.mxu0 0
    %124 = vmatpush2.bf16.msra.mxu0 0
    %125 = vmatprep.subr.bf16.mxu0 0
    %126 = vmatpush2.bf16.msra.mxu0 0
    %127 = vmatprep.subr.bf16.mxu0 0
    %128 = vmatpush2.bf16.msra.mxu0 0
    %129 = vmatprep.subr.bf16.mxu0 0
    %130 = vmatpush2.bf16.msra.mxu0 0
    %131 = vmatprep.subr.bf16.mxu0 0
    %132 = vmatpush2.bf16.msra.mxu0 0
    %133 = vmatprep.subr.bf16.mxu0 0
    %134 = vmatpush2.bf16.msra.mxu0 0
    %135 = vmatprep.subr.bf16.mxu0 0
    %136 = vmatpush2.bf16.msra.mxu0 0
    %137 = vmatprep.subr.bf16.mxu0 0
    %138 = vmatpush2.bf16.msra.mxu0 0
    %139 = vmatprep.mubr.bf16.mxu0 0
    %140 = vmatmul.mubr.bf16.gmra.mxu0 %v93
    %v141 = vpop.f32.mrf.mxu0
    %v142 = vadd.f32 %v41, %v141
    %v143 = vpop.f32.mrf.mxu0
    %v144 = vpop.f32.mrf.mxu0
    %v145 = vadd.f32 %v46, %v144
    %v146 = vpop.f32.mrf.mxu0
    %147 = vmatprep.mubr.bf16.mxu0 0
    %148 = vmatmul.mubr.bf16.gmra.mxu0 %v96
    %v149 = vpop.f32.mrf.mxu0
    %v150 = vadd.f32 %v51, %v149
    %v151 = vpop.f32.mrf.mxu0
    %v152 = vpop.f32.mrf.mxu0
    %v153 = vadd.f32 %v56, %v152
    %v154 = vpop.f32.mrf.mxu0
    %155 = vmatprep.mubr.bf16.mxu0 0
    %156 = vmatmul.mubr.bf16.gmra.mxu0 %v99
    %v157 = vpop.f32.mrf.mxu0
    %v158 = vadd.f32 %v61, %v157
    %v159 = vpop.f32.mrf.mxu0
    %v160 = vpop.f32.mrf.mxu0
    %v161 = vpop.f32.mrf.mxu0
    %162 = vdwg.mxu0
    %v163 = vmax.f32 %v142, 0.0
    %v164 = vmax.f32 %v145, 0.0
    %v165 = vmax.f32 %v150, 0.0
    %v166 = vmax.f32 %v153, 0.0
    %v167 = vmax.f32 %v158, 0.0
    %v168 = vld [vmem:[%s3] sm:$0xff]
    %v169 = vld [vmem:[%s3 + $0x8] sm:$0xff]
    %v170 = vld [vmem:[%s3 + $0x10] sm:$0xff]
    %v171 = vld [vmem:[%s3 + $0x18] sm:$0xff]
    %v172 = vld [vmem:[%s3 + $0x20] sm:$0x3]
    %174 = vset.pattern.permute.xlu0 0
    %175 = vperm.xlu0 %174, %v168
    %v176 = vpop.permute.xlu0 %175
    %179 = vset.pattern.permute.xlu0 0
    %180 = vperm.xlu0 %179, %v169
    %v181 = vpop.permute.xlu0 %180
    %184 = vset.pattern.permute.xlu0 0
    %185 = vperm.xlu0 %184, %v170
    %v186 = vpop.permute.xlu0 %185
    %189 = vset.pattern.permute.xlu0 0
    %190 = vperm.xlu0 %189, %v171
    %v191 = vpop.permute.xlu0 %190
    %194 = vset.pattern.permute.xlu0 0
    %195 = vperm.xlu0 %194, %v172
    %v196 = vpop.permute.xlu0 %195
    %v198 = vmul.f32 %v163, %v176
    %v199 = vmul.f32 %v164, %v181
    %v200 = vmul.f32 %v165, %v186
    %v201 = vmul.f32 %v166, %v191
    %v202 = vmul.f32 %v167, %v196
    %v203 = vadd.f32 %v198, %v199
    %v204 = vadd.f32 %v203, %v200
    %v205 = vadd.f32 %v204, %v201
    %vm206 = vcmask 1041408
    %v207 = vsel %vm206, %v202, 0.0
    %v208 = vadd.f32 %v205, %v207
    %v209 = vrot.slane %v208, 4
    %v210 = vadd.f32 %v208, %v209
    %v211 = vrot.slane %v210, 2
    %v212 = vadd.f32 %v210, %v211
    %v213 = vrot.slane %v212, 1
    %v214 = vadd.f32 %v212, %v213
    %s215 = sld [smem:[#allocation2]]
    %v216 = vstv %s215
    %v217 = vadd.f32 %v214, %v216
    %v218 = vsub.f32 0.0, %v217
    %v219 = vmul.f32 %v218, 1.442695
    %v220 = vpow.pop %v219
    %v221 = vadd.f32 %v220, 1.0
    %v222 = vrcp.pop %v221
    %223 = vst [vmem:[#allocation3] sm:$0x1] %v222
    // Predicated region
    $region22: #{tpu_custom_call.1} parent=1 // pred_check
      _
    $region23: #{tpu_custom_call.1} parent=1 // pred_check_branch
      %225 = sbr.rel (0) target = $region25
    $region24: #{tpu_custom_call.1} parent=1 // pred_region
      %s227 = ssub.s32 16, 16
      %228 = vsyncadd [#allocation4], %s227
      %s230 = sshll.u32 [#allocation3], 4
      %s231 = int_to_ptr.vmem [resolvable:$true] %s230
      %233 = dma.vmem_to_hbm [thread:$0]  %s231, 16, %s5, [#allocation4]
    $region25: #{tpu_custom_call.1} parent=1 // pred_fallthru
      _
    // Predicated region
    $region26: #{tpu_custom_call.1} parent=1 // pred_check
      _
    $region27: #{tpu_custom_call.1} parent=1 // pred_check_branch
      %235 = sbr.rel (0) target = $region29
    $region28: #{tpu_custom_call.1} parent=1 // pred_region
      %236 = dma.done [#allocation4], 16
    $region29: #{tpu_custom_call.1} parent=1 // pred_fallthru
      _
    %237 = vsyncpa [#allocation4], 1

</llo_original>
